<compile_context>
chip_gen: v5e
topology: v5e:2x2
jax: 0.10.0
libtpu: 0.0.40
codegen_flags: <defaults>
</compile_context>

<pallas_src>
import jax
import jax.numpy as jnp
from jax.experimental import pallas as pl
from jax.experimental.pallas import tpu as pltpu


def _round_up(x, m):
    return (x + m - 1) // m * m


def _mxu_align(d):
    # Align MXU-facing dims to 256 (v6e/v7x 2x256^2 MXU) once they exceed a single 128-lane
    # vreg; tiny toy dims stay at 128 to avoid 4x padding blowup.
    return _round_up(d, 256) if d > 128 else _round_up(d, 128)


def hybrid_embed_kernel(xp_ref, w1_ref, b1_ref, w2_ref, b2_ref, o_ref):
    # xp_ref: (TM, K1p) bf16   row tile of im2col patches (B*N folded into M)
    # w1_ref: (K1p, Fp) bf16   backbone patchify-conv weight (padded, single-buffered constant)
    # b1_ref: (1, Fp)   f32    backbone conv bias (padded)
    # w2_ref: (Fp, Ep)  bf16   1x1 projection conv weight (padded, single-buffered constant)
    # b2_ref: (1, Ep)   f32    projection bias (padded)
    # o_ref : (TM, Ep)         lane-dense output tile
    h = jnp.dot(xp_ref[...], w1_ref[...], preferred_element_type=jnp.float32)  # MXU, f32 acc
    h = h + b1_ref[...]
    h = jax.nn.gelu(h)  # tanh-approx GELU in f32 (VPU/EUP; v5e has no bf16 elementwise path)
    y = jnp.dot(h.astype(jnp.bfloat16), w2_ref[...],
                preferred_element_type=jnp.float32)                             # 1x1 proj conv
    y = y + b2_ref[...]
    o_ref[...] = y.astype(o_ref.dtype)


def prepack_weights(w1, b1, w2, b2):
    """One-time (module-init) packing: pad MXU-facing dims, cast matmul operands to bf16."""
    K1, F = w1.shape
    E = w2.shape[1]
    K1p, Fp, Ep = _mxu_align(K1), _mxu_align(F), _mxu_align(E)
    w1_p = jnp.pad(w1.astype(jnp.bfloat16), ((0, K1p - K1), (0, Fp - F)))
    w2_p = jnp.pad(w2.astype(jnp.bfloat16), ((0, Fp - F), (0, Ep - E)))
    b1_p = jnp.pad(b1.astype(jnp.float32), (0, Fp - F)).reshape(1, Fp)
    b2_p = jnp.pad(b2.astype(jnp.float32), (0, Ep - E)).reshape(1, Ep)
    return (w1_p, b1_p, w2_p, b2_p), (K1, F, E)


def hybrid_embedding(x_nchw, packed, dims, patch, out_dtype=None):
    """x_nchw: (B, C, H, W) -> (B, num_patches, embed_dim).

    `packed`/`dims` come from prepack_weights().  Pass out_dtype=jnp.bfloat16 when the consumer
    is a bf16 transformer stack to halve the largest HBM write.
    """
    w1_p, b1_p, w2_p, b2_p = packed
    K1, F, E = dims
    B, C, H, W = x_nchw.shape
    P = patch
    Hf, Wf = H // P, W // P
    N = Hf * Wf
    M = B * N
    K1p, Fp = w1_p.shape
    Ep = w2_p.shape[1]
    out_dtype = x_nchw.dtype if out_dtype is None else out_dtype

    # im2col in bf16 (half the HBM bytes of an f32 im2col): (B,C,H,W) -> (B*N, K1).  Matches the
    # PyTorch Conv2d weight flattening order (out, C, kh, kw) + row-major spatial flatten.
    xp = (x_nchw.astype(jnp.bfloat16)
          .reshape(B, C, Hf, P, Wf, P)
          .transpose(0, 2, 4, 1, 3, 5)
          .reshape(M, K1))
    if K1p != K1:  # lane-pad the contraction dim only when needed
        xp = jnp.pad(xp, ((0, 0), (0, K1p - K1)))

    # Row tiling: big tiles amortize the ~0.35us/grid-step overhead (TM=512 ~85% of HBM roofline
    # on v6e).  Split small M in two only on 2-TC chips (v7x); v5e/v6e run the grid serially.
    try:
        two_tc = "v7" in jax.devices()[0].device_kind.lower()
    except Exception:  # pragma: no cover - conservative fallback
        two_tc = False
    if M > 512:
        TM = 512
    elif two_tc and M > 16:
        TM = max(8, _round_up(pl.cdiv(M, 2), 8))
    else:
        TM = max(8, _round_up(M, 8))
    grid_m = pl.cdiv(M, TM)

    # Explicit VMEM budget: double-buffered xp/out tiles + single-buffered weights/biases +
    # in-kernel f32 intermediate h and its bf16 recast.  Cap with headroom for v7x's 64 MiB.
    out_bytes = jnp.dtype(out_dtype).itemsize
    vmem_est = (2 * TM * K1p * 2
                + 2 * TM * Ep * out_bytes
                + (K1p * Fp + Fp * Ep) * 2
                + (Fp + Ep) * 4
                + TM * Fp * (4 + 2))
    vmem_limit = int(min(48 << 20, max(16 << 20, vmem_est + (vmem_est // 2) + (2 << 20))))

    const_map = lambda m: (0, 0)  # constant index_map: operand DMA'd once, stays resident
    out_p = pl.pallas_call(
        hybrid_embed_kernel,
        out_shape=jax.ShapeDtypeStruct((M, Ep), out_dtype),
        grid_spec=pltpu.PrefetchScalarGridSpec(
            num_scalar_prefetch=0,
            grid=(grid_m,),
            in_specs=[
                pl.BlockSpec((TM, K1p), lambda m: (m, 0)),
                pl.BlockSpec((K1p, Fp), const_map,
                             pipeline_mode=pl.Buffered(buffer_count=1)),
                pl.BlockSpec((1, Fp), const_map,
                             pipeline_mode=pl.Buffered(buffer_count=1)),
                pl.BlockSpec((Fp, Ep), const_map,
                             pipeline_mode=pl.Buffered(buffer_count=1)),
                pl.BlockSpec((1, Ep), const_map,
                             pipeline_mode=pl.Buffered(buffer_count=1)),
            ],
            out_specs=pl.BlockSpec((TM, Ep), lambda m: (m, 0)),
        ),
        compiler_params=pltpu.CompilerParams(
            dimension_semantics=("parallel",),
            vmem_limit_bytes=vmem_limit,
        ),
    )(xp, w1_p, b1_p, w2_p, b2_p)

    out = out_p if Ep == E else out_p[:, :E]
    return out.reshape(B, N, E)


def reference(x_nchw, w1, b1, w2, b2, patch):
    """Pure-JAX f32 reference replicating the module forward (backbone -> proj -> flatten.T)."""
    B, C, H, W = x_nchw.shape
    P = patch
    Hf, Wf = H // P, W // P
    K1 = C * P * P
    F = w1.shape[1]
    E = w2.shape[1]
    xp = x_nchw.reshape(B, C, Hf, P, Wf, P).transpose(0, 2, 4, 1, 3, 5).reshape(B, Hf * Wf, K1)
    h = jax.nn.gelu(xp @ w1 + b1.reshape(1, 1, F))   # backbone(x): patchify conv + GELU
    y = h @ w2 + b2.reshape(1, 1, E)                  # proj (1x1 conv), already (B, N, E)
    return y


if __name__ == "__main__":
    # Small shapes consistent with the module's forward:
    #   input (B, C, H, W) = (2, 4, 16, 16), patchify stride 4 -> feature_size = 4,
    #   num_patches = 16, backbone.num_features = 32, embed_dim = 32.
    B, C, H, W = 2, 4, 16, 16
    P = 4
    F = 32          # backbone num_features
    E = 32          # embed_dim
    K1 = C * P * P

    key = jax.random.PRNGKey(0)
    kx, kw1, kb1, kw2, kb2 = jax.random.split(key, 5)
    x = jax.random.normal(kx, (B, C, H, W), dtype=jnp.float32)
    w1 = jax.random.normal(kw1, (K1, F), dtype=jnp.float32) * 0.05
    b1 = jax.random.normal(kb1, (F,), dtype=jnp.float32) * 0.05
    w2 = jax.random.normal(kw2, (F, E), dtype=jnp.float32) * 0.05
    b2 = jax.random.normal(kb2, (E,), dtype=jnp.float32) * 0.05

    packed, dims = prepack_weights(w1, b1, w2, b2)   # one-time, module init
    out = hybrid_embedding(x, packed, dims, P)
    out = jax.block_until_ready(out)

    ref = reference(x, w1, b1, w2, b2, P)
    assert out.shape == (B, (H // P) * (W // P), E), out.shape
    # Tolerance accounts for bf16 MXU operands (f32 accumulation) vs the pure-f32 reference.
    assert jnp.allclose(out, ref, atol=2e-2, rtol=2e-2), float(jnp.max(jnp.abs(out - ref)))

    print("KERNEL_OK")
</pallas_src>

<mosaic_0001>
module attributes {stable_mosaic.version = 11 : i64} {
  func.func @hybrid_embed_kernel(%arg0: i32, %arg1: memref<32x128xbf16, #tpu.memory_space<vmem>>, %arg2: memref<128x128xbf16, #tpu.memory_space<vmem>>, %arg3: memref<1x128xf32, #tpu.memory_space<vmem>>, %arg4: memref<128x128xbf16, #tpu.memory_space<vmem>>, %arg5: memref<1x128xf32, #tpu.memory_space<vmem>>, %arg6: memref<32x128xf32, #tpu.memory_space<vmem>>) attributes {dimension_semantics = [#tpu.dimension_semantics<parallel>], iteration_bounds = array<i64: 1>, scalar_prefetch = 0 : i64, scratch_operands = 0 : i64, tpu.core_type = #tpu.core_type<tc>, window_params = [{transform_indices = @transform_0, window_bounds = array<i64: 32, 128>}, {pipeline_mode = #tpu.pipeline_mode<synchronous>, transform_indices = @transform_1, window_bounds = array<i64: 128, 128>}, {pipeline_mode = #tpu.pipeline_mode<synchronous>, transform_indices = @transform_2, window_bounds = array<i64: 1, 128>}, {pipeline_mode = #tpu.pipeline_mode<synchronous>, transform_indices = @transform_3, window_bounds = array<i64: 128, 128>}, {pipeline_mode = #tpu.pipeline_mode<synchronous>, transform_indices = @transform_4, window_bounds = array<i64: 1, 128>}, {transform_indices = @transform_5, window_bounds = array<i64: 32, 128>}]} {
    %c0 = arith.constant 0 : index
    %c0_0 = arith.constant 0 : index
    %0 = vector.load %arg1[%c0, %c0_0] : memref<32x128xbf16, #tpu.memory_space<vmem>>, vector<32x128xbf16>
    %c0_1 = arith.constant 0 : index
    %c0_2 = arith.constant 0 : index
    %1 = vector.load %arg2[%c0_1, %c0_2] : memref<128x128xbf16, #tpu.memory_space<vmem>>, vector<128x128xbf16>
    %cst = arith.constant dense<0.000000e+00> : vector<32x128xf32>
    %2 = tpu.matmul %0, %1, %cst {dimension_numbers = #tpu.dot_dimension_numbers<[1], [0], [0], [1], [0, 0, 1, 1], [], []>} : vector<32x128xbf16>, vector<128x128xbf16>, vector<32x128xf32> -> vector<32x128xf32>
    %c0_3 = arith.constant 0 : index
    %c0_4 = arith.constant 0 : index
    %3 = vector.load %arg3[%c0_3, %c0_4] : memref<1x128xf32, #tpu.memory_space<vmem>>, vector<1x128xf32>
    %4 = vector.broadcast %3 : vector<1x128xf32> to vector<32x128xf32>
    %5 = arith.addf %2, %4 : vector<32x128xf32>
    %6 = arith.mulf %5, %5 : vector<32x128xf32>
    %7 = arith.mulf %5, %6 : vector<32x128xf32>
    %cst_5 = arith.constant 4.471500e-02 : f32
    %8 = vector.broadcast %cst_5 : f32 to vector<32x128xf32>
    %9 = arith.mulf %8, %7 : vector<32x128xf32>
    %10 = arith.addf %5, %9 : vector<32x128xf32>
    %cst_6 = arith.constant 0.797884583 : f32
    %11 = vector.broadcast %cst_6 : f32 to vector<32x128xf32>
    %12 = arith.mulf %11, %10 : vector<32x128xf32>
    %13 = math.tanh %12 : vector<32x128xf32>
    %cst_7 = arith.constant 1.000000e+00 : f32
    %14 = vector.broadcast %cst_7 : f32 to vector<32x128xf32>
    %15 = arith.addf %14, %13 : vector<32x128xf32>
    %cst_8 = arith.constant 5.000000e-01 : f32
    %16 = vector.broadcast %cst_8 : f32 to vector<32x128xf32>
    %17 = arith.mulf %16, %15 : vector<32x128xf32>
    %18 = arith.mulf %5, %17 : vector<32x128xf32>
    %19 = arith.truncf %18 : vector<32x128xf32> to vector<32x128xbf16>
    %c0_9 = arith.constant 0 : index
    %c0_10 = arith.constant 0 : index
    %20 = vector.load %arg4[%c0_9, %c0_10] : memref<128x128xbf16, #tpu.memory_space<vmem>>, vector<128x128xbf16>
    %cst_11 = arith.constant dense<0.000000e+00> : vector<32x128xf32>
    %21 = tpu.matmul %19, %20, %cst_11 {dimension_numbers = #tpu.dot_dimension_numbers<[1], [0], [0], [1], [0, 0, 1, 1], [], []>} : vector<32x128xbf16>, vector<128x128xbf16>, vector<32x128xf32> -> vector<32x128xf32>
    %c0_12 = arith.constant 0 : index
    %c0_13 = arith.constant 0 : index
    %22 = vector.load %arg5[%c0_12, %c0_13] : memref<1x128xf32, #tpu.memory_space<vmem>>, vector<1x128xf32>
    %23 = vector.broadcast %22 : vector<1x128xf32> to vector<32x128xf32>
    %24 = arith.addf %21, %23 : vector<32x128xf32>
    %c0_14 = arith.constant 0 : index
    %c0_15 = arith.constant 0 : index
    %25 = vector.load %arg6[%c0_14, %c0_15] : memref<32x128xf32, #tpu.memory_space<vmem>>, vector<32x128xf32>
    tpu.vector_store %arg6[%c0_14, %c0_15], %24 {strides = array<i32>} : memref<32x128xf32, #tpu.memory_space<vmem>>, vector<32x128xf32>,
    return
  }
  func.func @transform_0(%arg0: i32) -> (i32, i32) {
    %c0_i32 = arith.constant 0 : i32
    %c0_i32_0 = arith.constant 0 : i32
    return %arg0, %c0_i32 : i32, i32
  }
  func.func @transform_1(%arg0: i32) -> (i32, i32) {
    %c0_i32 = arith.constant 0 : i32
    %c0_i32_0 = arith.constant 0 : i32
    %c0_i32_1 = arith.constant 0 : i32
    return %c0_i32, %c0_i32_0 : i32, i32
  }
  func.func @transform_2(%arg0: i32) -> (i32, i32) {
    %c0_i32 = arith.constant 0 : i32
    %c0_i32_0 = arith.constant 0 : i32
    %c0_i32_1 = arith.constant 0 : i32
    return %c0_i32, %c0_i32_0 : i32, i32
  }
  func.func @transform_3(%arg0: i32) -> (i32, i32) {
    %c0_i32 = arith.constant 0 : i32
    %c0_i32_0 = arith.constant 0 : i32
    %c0_i32_1 = arith.constant 0 : i32
    return %c0_i32, %c0_i32_0 : i32, i32
  }
  func.func @transform_4(%arg0: i32) -> (i32, i32) {
    %c0_i32 = arith.constant 0 : i32
    %c0_i32_0 = arith.constant 0 : i32
    %c0_i32_1 = arith.constant 0 : i32
    return %c0_i32, %c0_i32_0 : i32, i32
  }
  func.func @transform_5(%arg0: i32) -> (i32, i32) {
    %c0_i32 = arith.constant 0 : i32
    %c0_i32_0 = arith.constant 0 : i32
    return %arg0, %c0_i32 : i32, i32
  }
}

</mosaic_0001>

<llo_original>
// kernel: tpu_custom_call.1
$region0: #{tpu_custom_call.1}
  #allocation0 [shape = 'u32[]', space=smem, size = 0x4, offset = 0x4, fixed_abs, tag = 'smem constant byte address 0x4 - core index']
  #allocation1 [shape = 'u32[72,128]{1,0:T(1,128)}', space=vmem, size = 0x9000, scoped, tag = 'internal scratch']
  %s0 = inlined_call_operand.hbm [shape: bf16[32,128], index: 0, kind: input, shape index: {}]
  %s1 = inlined_call_operand.hbm [shape: bf16[128,128], index: 1, kind: input, shape index: {}]
  %s2 = inlined_call_operand.vmem [shape: f32[1,128], index: 2, kind: input, shape index: {}]
  %s3 = inlined_call_operand.hbm [shape: bf16[128,128], index: 3, kind: input, shape index: {}]
  %s4 = inlined_call_operand.vmem [shape: f32[1,128], index: 4, kind: input, shape index: {}]
  %s5 = inlined_call_operand.hbm [shape: f32[32,128], index: 5, kind: output, shape index: {}]
  %s6 = sld [smem:[#allocation0]]
  $region42: #{tpu_custom_call.1} parent=0
    _
  %s8 = ssub.s32 1, %s6
  %s9 = scalar_select 0, %s8, %s6
  $region1: #{tpu_custom_call.1} parent=0
    #allocation2 [shape = 'u8[8192]{0}', space=vmem, size = 0x2000, scoped, tag = 'input window, operand 0, single buffered']
    #allocation3 [shape = 's32[1]{0}', space=sflag, size = 0x4, scoped, tag = 'scoped memory for tpu_custom_call.1']
    #allocation4 [shape = 's32[1]{0}', space=sflag, size = 0x4, scoped, tag = 'scoped memory for tpu_custom_call.1']
    #allocation5 [shape = 'u8[32768]{0}', space=vmem, size = 0x8000, scoped, tag = 'input window, operand 1, single buffered']
    #allocation6 [shape = 's32[1]{0}', space=sflag, size = 0x4, scoped, tag = 'scoped memory for tpu_custom_call.1']
    #allocation7 [shape = 'u8[32768]{0}', space=vmem, size = 0x8000, scoped, tag = 'input window, operand 3, single buffered']
    #allocation8 [shape = 'u8[16384]{0}', space=vmem, size = 0x4000, scoped, tag = 'output window, operand 0, single buffered']
    %10 = vsyncpa [#allocation3], 0
    %11 = vsyncpa [#allocation6], 0
    %12 = vsyncpa [#allocation4], 0
    // Predicated region
    $region2: #{tpu_custom_call.1} parent=1 // pred_check
      _
    $region3: #{tpu_custom_call.1} parent=1 // pred_check_branch
      %14 = sbr.rel (0) target = $region5
    $region4: #{tpu_custom_call.1} parent=1 // pred_region
      %16 = vsyncadd [#allocation3], 0
      %s17 = sshll.u32 %s0, 4
      %s18 = int_to_ptr.hbm [resolvable:$true] %s17
      %s19 = sshll.u32 [#allocation2], 4
      %s20 = int_to_ptr.vmem [resolvable:$true] %s19
      %25 = dma.hbm_to_vmem [thread:$0]  %s18, 256, %s20, [#allocation3], 64, 64, 4
    $region5: #{tpu_custom_call.1} parent=1 // pred_fallthru
      _
    // Predicated region
    $region6: #{tpu_custom_call.1} parent=1 // pred_check
      _
    $region7: #{tpu_custom_call.1} parent=1 // pred_check_branch
      %27 = sbr.rel (0) target = $region9
    $region8: #{tpu_custom_call.1} parent=1 // pred_region
      %29 = vsyncadd [#allocation6], 0
      %s30 = sshll.u32 %s1, 4
      %s31 = int_to_ptr.hbm [resolvable:$true] %s30
      %s32 = sshll.u32 [#allocation5], 4
      %s33 = int_to_ptr.vmem [resolvable:$true] %s32
      %38 = dma.hbm_to_vmem [thread:$0]  %s31, 1024, %s33, [#allocation6], 64, 64, 4
    $region9: #{tpu_custom_call.1} parent=1 // pred_fallthru
      _
    // Predicated region
    $region10: #{tpu_custom_call.1} parent=1 // pred_check
      _
    $region11: #{tpu_custom_call.1} parent=1 // pred_check_branch
      %40 = sbr.rel (0) target = $region13
    $region12: #{tpu_custom_call.1} parent=1 // pred_region
      _
    $region13: #{tpu_custom_call.1} parent=1 // pred_fallthru
      _
    // Predicated region
    $region14: #{tpu_custom_call.1} parent=1 // pred_check
      _
    $region15: #{tpu_custom_call.1} parent=1 // pred_check_branch
      %42 = sbr.rel (0) target = $region17
    $region16: #{tpu_custom_call.1} parent=1 // pred_region
      %44 = vsyncadd [#allocation6], 0
      %s45 = sshll.u32 %s3, 4
      %s46 = int_to_ptr.hbm [resolvable:$true] %s45
      %s47 = sshll.u32 [#allocation7], 4
      %s48 = int_to_ptr.vmem [resolvable:$true] %s47
      %53 = dma.hbm_to_vmem [thread:$0]  %s46, 1024, %s48, [#allocation6], 64, 64, 4
    $region17: #{tpu_custom_call.1} parent=1 // pred_fallthru
      _
    // Predicated region
    $region18: #{tpu_custom_call.1} parent=1 // pred_check
      _
    $region19: #{tpu_custom_call.1} parent=1 // pred_check_branch
      %55 = sbr.rel (0) target = $region21
    $region20: #{tpu_custom_call.1} parent=1 // pred_region
      _
    $region21: #{tpu_custom_call.1} parent=1 // pred_fallthru
      _
    // Predicated region
    $region22: #{tpu_custom_call.1} parent=1 // pred_check
      _
    $region23: #{tpu_custom_call.1} parent=1 // pred_check_branch
      %57 = sbr.rel (0) target = $region25
    $region24: #{tpu_custom_call.1} parent=1 // pred_region
      %59 = dma.done [#allocation3], 256
    $region25: #{tpu_custom_call.1} parent=1 // pred_fallthru
      _
    // Predicated region
    $region26: #{tpu_custom_call.1} parent=1 // pred_check
      _
    $region27: #{tpu_custom_call.1} parent=1 // pred_check_branch
      %61 = sbr.rel (0) target = $region29
    $region28: #{tpu_custom_call.1} parent=1 // pred_region
      %63 = dma.done [#allocation6], 1024
    $region29: #{tpu_custom_call.1} parent=1 // pred_fallthru
      _
    // Predicated region
    $region30: #{tpu_custom_call.1} parent=1 // pred_check
      _
    $region31: #{tpu_custom_call.1} parent=1 // pred_check_branch
      %65 = sbr.rel (0) target = $region33
    $region32: #{tpu_custom_call.1} parent=1 // pred_region
      %67 = dma.done [#allocation6], 1024
    $region33: #{tpu_custom_call.1} parent=1 // pred_fallthru
      _
    %v68 = vld [vmem:[#allocation2] sm:$0xf]
    %v69 = vld [vmem:[#allocation2 + $0x4] sm:$0xf]
    %v70 = vld [vmem:[#allocation2 + $0x8] sm:$0xf]
    %v71 = vld [vmem:[#allocation2 + $0xc] sm:$0xf]
    %v72 = vld [vmem:[#allocation5] sm:$0xf]
    %v73 = vld [vmem:[#allocation5 + $0x4] sm:$0xf]
    %v74 = vld [vmem:[#allocation5 + $0x8] sm:$0xf]
    %v75 = vld [vmem:[#allocation5 + $0xc] sm:$0xf]
    %v76 = vld [vmem:[#allocation5 + $0x10] sm:$0xf]
    %v77 = vld [vmem:[#allocation5 + $0x14] sm:$0xf]
    %v78 = vld [vmem:[#allocation5 + $0x18] sm:$0xf]
    %v79 = vld [vmem:[#allocation5 + $0x1c] sm:$0xf]
    %v80 = vld [vmem:[#allocation5 + $0x20] sm:$0xf]
    %v81 = vld [vmem:[#allocation5 + $0x24] sm:$0xf]
    %v82 = vld [vmem:[#allocation5 + $0x28] sm:$0xf]
    %v83 = vld [vmem:[#allocation5 + $0x2c] sm:$0xf]
    %v84 = vld [vmem:[#allocation5 + $0x30] sm:$0xf]
    %v85 = vld [vmem:[#allocation5 + $0x34] sm:$0xf]
    %v86 = vld [vmem:[#allocation5 + $0x38] sm:$0xf]
    %v87 = vld [vmem:[#allocation5 + $0x3c] sm:$0xf]
    %v88 = vld [vmem:[%s2] sm:$0x1]
    %v90 = vperm.slane %v88, 0
    %v96 = vunpack.c.l.b16 %v68
    %v97 = vunpack.c.l.b16 %v69
    %v98 = vunpack.c.l.b16 %v70
    %v99 = vunpack.c.l.b16 %v71
    %v100 = vpack.c.b16 %v97, %v96
    %v101 = vpack.c.b16 %v99, %v98
    %v120 = vunpack.c.l.b16 %v72
    %v121 = vunpack.c.l.b16 %v73
    %v122 = vunpack.c.l.b16 %v74
    %v123 = vunpack.c.l.b16 %v75
    %v124 = vunpack.c.l.b16 %v76
    %v125 = vunpack.c.l.b16 %v77
    %v126 = vunpack.c.l.b16 %v78
    %v127 = vunpack.c.l.b16 %v79
    %v128 = vunpack.c.l.b16 %v80
    %v129 = vunpack.c.l.b16 %v81
    %v130 = vunpack.c.l.b16 %v82
    %v131 = vunpack.c.l.b16 %v83
    %v132 = vunpack.c.l.b16 %v84
    %v133 = vunpack.c.l.b16 %v85
    %v134 = vunpack.c.l.b16 %v86
    %v135 = vunpack.c.l.b16 %v87
    %v136 = vpack.c.b16 %v121, %v120
    %v137 = vpack.c.b16 %v123, %v122
    %v138 = vpack.c.b16 %v125, %v124
    %v139 = vpack.c.b16 %v127, %v126
    %v140 = vpack.c.b16 %v129, %v128
    %v141 = vpack.c.b16 %v131, %v130
    %v142 = vpack.c.b16 %v133, %v132
    %v143 = vpack.c.b16 %v135, %v134
    %152 = vmatpush.bf16.msra.mxu0 %v143
    %153 = vmatpush.bf16.msra.mxu0 %v142
    %154 = vmatpush.bf16.msra.mxu0 %v141
    %155 = vmatpush.bf16.msra.mxu0 %v140
    %156 = vmatpush.bf16.msra.mxu0 %v139
    %157 = vmatpush.bf16.msra.mxu0 %v138
    %158 = vmatpush.bf16.msra.mxu0 %v137
    %159 = vmatpush.bf16.msra.mxu0 %v136
    %160 = vmatmul.bf16.gmra.mxu0 %v100
    %v161 = vpop.f32.mrf.mxu0
    %v162 = vadd.f32 %v90, %v161
    %v163 = vpop.f32.mrf.mxu0
    %v164 = vadd.f32 %v90, %v163
    %165 = vmatmul.bf16.gmra.mxu0 %v101
    %v166 = vpop.f32.mrf.mxu0
    %v167 = vadd.f32 %v90, %v166
    %v168 = vpop.f32.mrf.mxu0
    %v169 = vadd.f32 %v90, %v168
    %170 = vdwg.mxu0
    %v171 = vmul.f32 %v162, %v162
    %v172 = vmul.f32 %v164, %v164
    %v173 = vmul.f32 %v167, %v167
    %v174 = vmul.f32 %v169, %v169
    %v175 = vmul.f32 %v162, %v171
    %v176 = vmul.f32 %v164, %v172
    %v177 = vmul.f32 %v167, %v173
    %v178 = vmul.f32 %v169, %v174
    %v179 = vmul.f32 %v175, 0.044715
    %v180 = vmul.f32 %v176, 0.044715
    %v181 = vmul.f32 %v177, 0.044715
    %v182 = vmul.f32 %v178, 0.044715
    %v183 = vadd.f32 %v162, %v179
    %v184 = vadd.f32 %v164, %v180
    %v185 = vadd.f32 %v167, %v181
    %v186 = vadd.f32 %v169, %v182
    %v187 = vmul.f32 %v183, 0.7978846
    %v188 = vmul.f32 %v184, 0.7978846
    %v189 = vmul.f32 %v185, 0.7978846
    %v190 = vmul.f32 %v186, 0.7978846
    %v191 = vtanh.pop %v187
    %v192 = vtanh.pop %v188
    %v193 = vtanh.pop %v189
    %v194 = vtanh.pop %v190
    %v195 = vadd.f32 %v191, 1.0
    %v196 = vadd.f32 %v192, 1.0
    %v197 = vadd.f32 %v193, 1.0
    %v198 = vadd.f32 %v194, 1.0
    %v199 = vmul.f32 %v195, 0.5
    %v200 = vmul.f32 %v196, 0.5
    %v201 = vmul.f32 %v197, 0.5
    %v202 = vmul.f32 %v198, 0.5
    %v203 = vmul.f32 %v162, %v199
    %v204 = vmul.f32 %v164, %v200
    %v205 = vmul.f32 %v167, %v201
    %v206 = vmul.f32 %v169, %v202
    %v207 = vpack.c.bf16 %v204, %v203
    %v208 = vpack.c.bf16 %v206, %v205
    %v209 = vld [vmem:[#allocation7] sm:$0xf]
    %v210 = vld [vmem:[#allocation7 + $0x4] sm:$0xf]
    %v211 = vld [vmem:[#allocation7 + $0x8] sm:$0xf]
    %v212 = vld [vmem:[#allocation7 + $0xc] sm:$0xf]
    %v213 = vld [vmem:[#allocation7 + $0x10] sm:$0xf]
    %v214 = vld [vmem:[#allocation7 + $0x14] sm:$0xf]
    %v215 = vld [vmem:[#allocation7 + $0x18] sm:$0xf]
    %v216 = vld [vmem:[#allocation7 + $0x1c] sm:$0xf]
    %v217 = vld [vmem:[#allocation7 + $0x20] sm:$0xf]
    %v218 = vld [vmem:[#allocation7 + $0x24] sm:$0xf]
    %v219 = vld [vmem:[#allocation7 + $0x28] sm:$0xf]
    %v220 = vld [vmem:[#allocation7 + $0x2c] sm:$0xf]
    %v221 = vld [vmem:[#allocation7 + $0x30] sm:$0xf]
    %v222 = vld [vmem:[#allocation7 + $0x34] sm:$0xf]
    %v223 = vld [vmem:[#allocation7 + $0x38] sm:$0xf]
    %v224 = vld [vmem:[#allocation7 + $0x3c] sm:$0xf]
    %v225 = vld [vmem:[%s4] sm:$0x1]
    %v227 = vperm.slane %v225, 0
    %v245 = vunpack.c.l.b16 %v209
    %v246 = vunpack.c.l.b16 %v210
    %v247 = vunpack.c.l.b16 %v211
    %v248 = vunpack.c.l.b16 %v212
    %v249 = vunpack.c.l.b16 %v213
    %v250 = vunpack.c.l.b16 %v214
    %v251 = vunpack.c.l.b16 %v215
    %v252 = vunpack.c.l.b16 %v216
    %v253 = vunpack.c.l.b16 %v217
    %v254 = vunpack.c.l.b16 %v218
    %v255 = vunpack.c.l.b16 %v219
    %v256 = vunpack.c.l.b16 %v220
    %v257 = vunpack.c.l.b16 %v221
    %v258 = vunpack.c.l.b16 %v222
    %v259 = vunpack.c.l.b16 %v223
    %v260 = vunpack.c.l.b16 %v224
    %v261 = vpack.c.b16 %v246, %v245
    %v262 = vpack.c.b16 %v248, %v247
    %v263 = vpack.c.b16 %v250, %v249
    %v264 = vpack.c.b16 %v252, %v251
    %v265 = vpack.c.b16 %v254, %v253
    %v266 = vpack.c.b16 %v256, %v255
    %v267 = vpack.c.b16 %v258, %v257
    %v268 = vpack.c.b16 %v260, %v259
    %277 = vmatpush.bf16.msra.mxu0 %v268
    %278 = vmatpush.bf16.msra.mxu0 %v267
    %279 = vmatpush.bf16.msra.mxu0 %v266
    %280 = vmatpush.bf16.msra.mxu0 %v265
    %281 = vmatpush.bf16.msra.mxu0 %v264
    %282 = vmatpush.bf16.msra.mxu0 %v263
    %283 = vmatpush.bf16.msra.mxu0 %v262
    %284 = vmatpush.bf16.msra.mxu0 %v261
    %285 = vmatmul.bf16.gmra.mxu0 %v207
    %v286 = vpop.f32.mrf.mxu0
    %v287 = vadd.f32 %v227, %v286
    %v288 = vpop.f32.mrf.mxu0
    %v289 = vadd.f32 %v227, %v288
    %290 = vmatmul.bf16.gmra.mxu0 %v208
    %v291 = vpop.f32.mrf.mxu0
    %v292 = vadd.f32 %v227, %v291
    %v293 = vpop.f32.mrf.mxu0
    %v294 = vadd.f32 %v227, %v293
    %295 = vdwg.mxu0
    %296 = vst [vmem:[#allocation8] sm:$0xff] %v287
    %297 = vst [vmem:[#allocation8 + $0x8] sm:$0xff] %v289
    %298 = vst [vmem:[#allocation8 + $0x10] sm:$0xff] %v292
    %299 = vst [vmem:[#allocation8 + $0x18] sm:$0xff] %v294
    // Predicated region
    $region34: #{tpu_custom_call.1} parent=1 // pred_check
      _
    $region35: #{tpu_custom_call.1} parent=1 // pred_check_branch
      %301 = sbr.rel (0) target = $region37
    $region36: #{tpu_custom_call.1} parent=1 // pred_region
      %303 = vsyncadd [#allocation4], 0
      %s304 = sshll.u32 [#allocation8], 4
      %s305 = int_to_ptr.vmem [resolvable:$true] %s304
      %s306 = sshll.u32 %s5, 4
      %s307 = int_to_ptr.hbm [resolvable:$true] %s306
      %312 = dma.vmem_to_hbm [thread:$0]  %s305, 512, %s307, [#allocation4], 128, 128, 8
    $region37: #{tpu_custom_call.1} parent=1 // pred_fallthru
      _
    // Predicated region
    $region38: #{tpu_custom_call.1} parent=1 // pred_check
      _
    $region39: #{tpu_custom_call.1} parent=1 // pred_check_branch
      %314 = sbr.rel (0) target = $region41
    $region40: #{tpu_custom_call.1} parent=1 // pred_region
      %316 = dma.done [#allocation4], 512
    $region41: #{tpu_custom_call.1} parent=1 // pred_fallthru
      _
    %317 = vsyncpa [#allocation3], 1
    %318 = vsyncpa [#allocation6], 1
    %319 = vsyncpa [#allocation4], 1

</llo_original>
